<compile_context>
chip_gen: v6e
topology: v6e:2x2x1
jax: 0.10.0
libtpu: 0.0.40
codegen_flags: <defaults>
</compile_context>

<pallas_src>
import numpy as np
import jax
import jax.numpy as jnp
from jax.experimental import pallas as pl
from jax.experimental.pallas import tpu as pltpu

BLOCK_ROWS_MAX = 1024  # rows of 128 lanes per grid step (512 KiB f32 / plane)


# ----------------------------------------------------------------------------
# small helpers
# ----------------------------------------------------------------------------

def _cdiv(a, b):
    return -(-a // b)


def _round_up(x, m):
    return _cdiv(x, m) * m


def _choose_rows(num_elems, max_rows=BLOCK_ROWS_MAX):
    """Pick (block_rows, padded_rows) for a flat element count."""
    rows = _cdiv(num_elems, 128)
    block_rows = min(max_rows, _round_up(rows, 8))
    rows_pad = _round_up(rows, block_rows)
    return block_rows, rows_pad


def _to_lane_rows(x_flat, rows_pad, pad_value):
    """1D array -> (rows_pad, 128) f32, padded with pad_value."""
    x = x_flat.astype(jnp.float32)
    pad = rows_pad * 128 - x.shape[0]
    if pad:
        x = jnp.pad(x, (0, pad), constant_values=pad_value)
    return x.reshape(rows_pad, 128)


def _to_planes(x_nchw, rows_pad, pad_value):
    """(N,C,H,W) -> channel-planar (C, rows_pad, 128) f32 (no NHWC transpose)."""
    N, C, H, W = x_nchw.shape
    flat = jnp.transpose(x_nchw.astype(jnp.float32), (1, 0, 2, 3)).reshape(C, -1)
    pad = rows_pad * 128 - flat.shape[1]
    if pad:
        flat = jnp.pad(flat, ((0, 0), (0, pad)), constant_values=pad_value)
    return flat.reshape(C, rows_pad, 128)


def _nearest_resize(x, size):
    """PyTorch F.interpolate(x, size=size) with default mode='nearest'. NCHW."""
    _, _, Hi, Wi = x.shape
    Ho, Wo = size
    hi = (jnp.arange(Ho) * Hi // Ho).astype(jnp.int32)
    wi = (jnp.arange(Wo) * Wi // Wo).astype(jnp.int32)
    return x[:, :, hi[:, None], wi[None, :]]


# ----------------------------------------------------------------------------
# Pallas kernels (lane-dense, planar, in-kernel masks, resident accumulators)
# ----------------------------------------------------------------------------

def _make_ce_kernel(num_cls):
    """Sum of per-pixel cross-entropy.  logits (C,TR,128), labels (TR,128)."""
    def kernel(logits_ref, labels_ref, sum_ref):
        @pl.when(pl.program_id(1) == 0)
        def _():
            sum_ref[...] = jnp.zeros_like(sum_ref)

        lab = labels_ref[...]                              # (TR, 128) f32
        valid = (lab >= 0.0).astype(jnp.float32)           # padded rows = -1
        lab_i = lab.astype(jnp.int32)

        xs = [logits_ref[c] for c in range(num_cls)]       # each (TR, 128)
        m = xs[0]
        for c in range(1, num_cls):
            m = jnp.maximum(m, xs[c])
        s = jnp.zeros_like(m)
        picked = jnp.zeros_like(m)
        for c in range(num_cls):
            s = s + jnp.exp(xs[c] - m)
            picked = picked + jnp.where(lab_i == c, xs[c], 0.0)
        lse = jnp.log(s) + m
        sum_ref[...] += (lse - picked) * valid
    return kernel


def _make_cos_kernel(has_mask):
    """Sum of cosine similarity of F.normalize'd rows + valid count.
    pred/gt are (3,TR,128) planes; validity derived in-kernel from gt."""
    def kernel(*refs):
        if has_mask:
            p_ref, g_ref, m_ref, s_ref, c_ref = refs
        else:
            p_ref, g_ref, s_ref, c_ref = refs

        @pl.when(pl.program_id(1) == 0)
        def _():
            s_ref[...] = jnp.zeros_like(s_ref)
            c_ref[...] = jnp.zeros_like(c_ref)

        px, py, pz = p_ref[0], p_ref[1], p_ref[2]
        gx, gy, gz = g_ref[0], g_ref[1], g_ref[2]

        valid = jnp.maximum(gx, jnp.maximum(gy, gz)) < 255.0  # gt pad = 255
        if has_mask:
            valid = jnp.logical_and(valid, m_ref[...].astype(jnp.int32) == 1)
        valid = valid.astype(jnp.float32)

        pp = px * px + py * py + pz * pz
        gg = gx * gx + gy * gy + gz * gz
        # F.normalize: v / max(||v||, 1e-12)  ==  v * rsqrt(max(||v||^2, 1e-24))
        inv_p = jax.lax.rsqrt(jnp.maximum(pp, 1e-24))
        inv_g = jax.lax.rsqrt(jnp.maximum(gg, 1e-24))
        pnx, pny, pnz = px * inv_p, py * inv_p, pz * inv_p
        gnx, gny, gnz = gx * inv_g, gy * inv_g, gz * inv_g

        num = pnx * gnx + pny * gny + pnz * gnz
        pn2 = pnx * pnx + pny * pny + pnz * pnz
        gn2 = gnx * gnx + gny * gny + gnz * gnz
        den = jnp.maximum(jnp.sqrt(pn2 * gn2), 1e-8)
        cos = num / den

        s_ref[...] += cos * valid
        c_ref[...] += valid
    return kernel


def _make_l1_kernel(mode):
    """Masked-L1 partial sums.  mode selects the in-kernel mask rule:
       'ne255'          : gt != 255
       'pos'            : gt > 3e-5
       'ne255_and_mask' : (gt != 255) & (user_mask == 1)
       'explicit'       : user-provided 0/1 mask plane."""
    def kernel(*refs):
        if mode in ("ne255_and_mask", "explicit"):
            p_ref, g_ref, m_ref, s_ref, c_ref = refs
        else:
            p_ref, g_ref, s_ref, c_ref = refs

        @pl.when(pl.program_id(1) == 0)
        def _():
            s_ref[...] = jnp.zeros_like(s_ref)
            c_ref[...] = jnp.zeros_like(c_ref)

        p = p_ref[...]
        g = g_ref[...]
        if mode == "ne255":
            m = (g != 255.0).astype(jnp.float32)
        elif mode == "pos":
            m = (g > 3e-5).astype(jnp.float32)
        elif mode == "ne255_and_mask":
            m = jnp.logical_and(g != 255.0,
                                m_ref[...].astype(jnp.int32) == 1).astype(jnp.float32)
        else:  # explicit
            m = m_ref[...]

        s_ref[...] += jnp.abs(p - g) * m
        c_ref[...] += m
    return kernel


# ----------------------------------------------------------------------------
# generic pallas_call wrapper: lane-dense row reduction with partial sums
# ----------------------------------------------------------------------------

def _reduce_call(kernel, inputs, block_rows, num_outputs):
    """inputs: arrays shaped (rows,128) or (C,rows,128), same padded rows.
    Returns `num_outputs` scalar partial-sum totals (jnp.sum of tile outputs)."""
    rows = inputs[0].shape[-2]
    nb = rows // block_rows
    # leading parallel axis: lets both TCs on v7x stream half the data each
    P = 2 if (nb >= 2 and nb % 2 == 0) else 1
    nb_inner = nb // P

    def in_spec(a):
        if a.ndim == 3:
            return pl.BlockSpec((a.shape[0], block_rows, 128),
                                lambda p, r: (0, p * nb_inner + r, 0))
        return pl.BlockSpec((block_rows, 128),
                            lambda p, r: (p * nb_inner + r, 0))

    out_specs = [pl.BlockSpec((block_rows, 128), lambda p, r: (p, 0))
                 for _ in range(num_outputs)]
    out_shape = tuple(jax.ShapeDtypeStruct((P * block_rows, 128), jnp.float32)
                      for _ in range(num_outputs))

    outs = pl.pallas_call(
        kernel,
        out_shape=out_shape,
        grid_spec=pltpu.PrefetchScalarGridSpec(
            num_scalar_prefetch=0,
            grid=(P, nb_inner),
            in_specs=[in_spec(a) for a in inputs],
            out_specs=out_specs),
        compiler_params=pltpu.CompilerParams(
            dimension_semantics=("parallel", "arbitrary")),
    )(*inputs)
    return [jnp.sum(o) for o in outs]


# ----------------------------------------------------------------------------
# Loss branches (mirroring DataCriterions methods)
# ----------------------------------------------------------------------------

def seg_loss(pred, gt):
    N, C, H, W = pred.shape
    gt_r = _nearest_resize(gt.astype(jnp.float32), (H, W))          # (N,1,H,W)
    E = N * H * W
    block_rows, rows_pad = _choose_rows(E)
    logits = _to_planes(pred, rows_pad, 0.0)                        # (C,rows,128)
    labels = _to_lane_rows(gt_r.reshape(-1), rows_pad, -1.0)        # pad = -1 -> invalid
    (total,) = _reduce_call(_make_ce_kernel(C), [logits, labels], block_rows, 1)
    return total / E


def sn_loss(pred, gt, mask=None):
    N, _, H, W = pred.shape
    E = N * H * W
    block_rows, rows_pad = _choose_rows(E)
    pr = _to_planes(pred, rows_pad, 0.0)                            # (3,rows,128)
    gt_r = _nearest_resize(gt.astype(jnp.float32), (H, W))
    gr = _to_planes(gt_r, rows_pad, 255.0)                          # pad invalidates
    inputs = [pr, gr]
    if mask is not None:
        m_r = _nearest_resize(mask.astype(jnp.float32), (H, W))[:, 0]  # channel 0
        inputs.append(_to_lane_rows(m_r.reshape(-1), rows_pad, 0.0))
    s, c = _reduce_call(_make_cos_kernel(mask is not None), inputs, block_rows, 2)
    return 1.0 - s / c


def _masked_l1(pred, gt, mode, user_mask=None):
    E = int(np.prod(pred.shape))
    block_rows, rows_pad = _choose_rows(E)
    gt_pad = 255.0 if mode in ("ne255", "ne255_and_mask") else 0.0
    p2 = _to_lane_rows(pred.reshape(-1), rows_pad, 0.0)
    g2 = _to_lane_rows(gt.reshape(-1), rows_pad, gt_pad)
    inputs = [p2, g2]
    if user_mask is not None:
        inputs.append(_to_lane_rows(user_mask.reshape(-1), rows_pad, 0.0))
    s, c = _reduce_call(_make_l1_kernel(mode), inputs, block_rows, 2)
    return s / c


def depth_loss(pred, gt, mask=None):
    N, C, H, W = pred.shape
    gt_r = _nearest_resize(gt.astype(jnp.float32), (H, W))
    gt_b = jnp.broadcast_to(gt_r, pred.shape).astype(jnp.float32)
    pred_f = pred.astype(jnp.float32)
    if mask is not None:
        m_r = _nearest_resize(mask.astype(jnp.float32), (H, W))
        m_b = jnp.broadcast_to(m_r, pred.shape).astype(jnp.float32)
        return _masked_l1(pred_f, gt_b, "ne255_and_mask", m_b)
    if gt_r.shape[1] == 1:
        # sum over gt's single channel == the value itself -> in-kernel mask
        return _masked_l1(pred_f, gt_b, "pos")
    bm = jnp.broadcast_to(jnp.sum(gt_r, axis=1, keepdims=True) > 3e-5,
                          pred.shape).astype(jnp.float32)
    return _masked_l1(pred_f, gt_b, "explicit", bm)


def keypoint_edge_loss(pred, gt):
    N, C, H, W = pred.shape
    gt_r = _nearest_resize(gt.astype(jnp.float32), (H, W))
    gt_b = jnp.broadcast_to(gt_r, pred.shape).astype(jnp.float32)
    return _masked_l1(pred.astype(jnp.float32), gt_b, "ne255")


def data_criterions(task, pred, gt, mask=None):
    """Forward of DataCriterions(task)."""
    if task == 'segment_semantic':
        return seg_loss(pred, gt)
    elif task == 'normal':
        return sn_loss(pred, gt, mask)
    elif task == 'depth_zbuffer':
        return depth_loss(pred, gt, mask)
    elif task == 'keypoints2d' or task == 'edge_texture':
        return keypoint_edge_loss(pred, gt)
    raise ValueError(task)


# ----------------------------------------------------------------------------
# Pure-JAX references (for correctness checking only)
# ----------------------------------------------------------------------------

def _nchw_to_rows(x, C):
    return jnp.transpose(x, (0, 2, 3, 1)).reshape(-1, C)


def _ref_seg(pred, gt):
    N, C, H, W = pred.shape
    logits = _nchw_to_rows(pred.astype(jnp.float32), C)
    labels = _nchw_to_rows(_nearest_resize(gt.astype(jnp.float32), (H, W)), 1)
    labels = labels[:, 0].astype(jnp.int32)
    lse = jax.nn.logsumexp(logits, axis=-1)
    picked = jnp.take_along_axis(logits, labels[:, None], axis=1)[:, 0]
    return jnp.mean(lse - picked)


def _ref_sn(pred, gt, mask=None):
    N, _, H, W = pred.shape
    pr = _nchw_to_rows(pred.astype(jnp.float32), 3)
    g = _nchw_to_rows(_nearest_resize(gt.astype(jnp.float32), (H, W)), 3)
    valid = jnp.max(g, axis=1) < 255.0
    if mask is not None:
        m = _nchw_to_rows(_nearest_resize(mask.astype(jnp.float32), (H, W)), 3)
        valid = jnp.logical_and(valid, m[:, 0].astype(jnp.int32) == 1)
    pr, g = pr[valid], g[valid]
    pn = pr / jnp.maximum(jnp.linalg.norm(pr, axis=1, keepdims=True), 1e-12)
    gn = g / jnp.maximum(jnp.linalg.norm(g, axis=1, keepdims=True), 1e-12)
    cos = jnp.sum(pn * gn, axis=1) / jnp.maximum(
        jnp.linalg.norm(pn, axis=1) * jnp.linalg.norm(gn, axis=1), 1e-8)
    return 1.0 - jnp.mean(cos)


def _ref_depth(pred, gt, mask=None):
    N, C, H, W = pred.shape
    g = _nearest_resize(gt.astype(jnp.float32), (H, W))
    if mask is not None:
        m = _nearest_resize(mask.astype(jnp.float32), (H, W))
        bm = jnp.logical_and(g != 255.0, m.astype(jnp.int32) == 1)
        bm = jnp.broadcast_to(bm, pred.shape)
    else:
        bm = jnp.broadcast_to(jnp.sum(g, axis=1, keepdims=True) > 3e-5, pred.shape)
    g = jnp.broadcast_to(g, pred.shape)
    return jnp.mean(jnp.abs(pred[bm] - g[bm]))


def _ref_keypoint(pred, gt):
    N, C, H, W = pred.shape
    g = jnp.broadcast_to(_nearest_resize(gt.astype(jnp.float32), (H, W)), pred.shape)
    bm = g != 255.0
    return jnp.mean(jnp.abs(pred[bm] - g[bm]))


# ----------------------------------------------------------------------------
# Demo
# ----------------------------------------------------------------------------

if __name__ == "__main__":
    key = jax.random.PRNGKey(0)
    ks = jax.random.split(key, 12)

    # segment_semantic: pred NCHW (2, 4, 16, 16), gt label map (2, 1, 32, 32)
    pred_seg = jax.random.normal(ks[0], (2, 4, 16, 16), jnp.float32)
    gt_seg = jax.random.randint(ks[1], (2, 1, 32, 32), 0, 4).astype(jnp.float32)

    # normal: pred (2, 3, 16, 16), gt (2, 3, 32, 32) with some 255 (invalid), mask
    pred_sn = jax.random.normal(ks[2], (2, 3, 16, 16), jnp.float32)
    gt_sn = jax.random.normal(ks[3], (2, 3, 32, 32), jnp.float32)
    inval = jax.random.bernoulli(ks[4], 0.2, (2, 1, 32, 32))
    gt_sn = jnp.where(inval, 255.0, gt_sn)
    mask_sn = jax.random.bernoulli(ks[5], 0.8, (2, 3, 32, 32)).astype(jnp.float32)

    # depth_zbuffer: pred (2, 1, 16, 16), gt (2, 1, 32, 32), mask
    pred_d = jax.random.uniform(ks[6], (2, 1, 16, 16), jnp.float32)
    gt_d = jax.random.uniform(ks[7], (2, 1, 32, 32), jnp.float32) * 2.0
    mask_d = jax.random.bernoulli(ks[8], 0.7, (2, 1, 32, 32)).astype(jnp.float32)

    # keypoints2d: pred (2, 1, 16, 16), gt (2, 1, 32, 32) with some 255
    pred_k = jax.random.normal(ks[9], (2, 1, 16, 16), jnp.float32)
    gt_k = jax.random.normal(ks[10], (2, 1, 32, 32), jnp.float32)
    inval_k = jax.random.bernoulli(ks[11], 0.15, (2, 1, 32, 32))
    gt_k = jnp.where(inval_k, 255.0, gt_k)

    results = {
        "segment_semantic": (data_criterions("segment_semantic", pred_seg, gt_seg),
                             _ref_seg(pred_seg, gt_seg)),
        "normal": (data_criterions("normal", pred_sn, gt_sn, mask_sn),
                   _ref_sn(pred_sn, gt_sn, mask_sn)),
        "normal_nomask": (data_criterions("normal", pred_sn, gt_sn),
                          _ref_sn(pred_sn, gt_sn, None)),
        "depth_zbuffer": (data_criterions("depth_zbuffer", pred_d, gt_d, mask_d),
                          _ref_depth(pred_d, gt_d, mask_d)),
        "depth_nomask": (data_criterions("depth_zbuffer", pred_d, gt_d),
                         _ref_depth(pred_d, gt_d, None)),
        "keypoints2d": (data_criterions("keypoints2d", pred_k, gt_k),
                        _ref_keypoint(pred_k, gt_k)),
    }

    for name, (got, ref) in results.items():
        got = jax.block_until_ready(got)
        np.testing.assert_allclose(np.asarray(got), np.asarray(ref),
                                   rtol=1e-3, atol=1e-4,
                                   err_msg=f"mismatch in {name}")

    print("KERNEL_OK")
</pallas_src>

<mosaic_0001>
module attributes {stable_mosaic.version = 11 : i64} {
  func.func @kernel(%arg0: i32, %arg1: i32, %arg2: memref<4x8x128xf32, #tpu.memory_space<vmem>>, %arg3: memref<8x128xf32, #tpu.memory_space<vmem>>, %arg4: memref<8x128xf32, #tpu.memory_space<vmem>>) attributes {dimension_semantics = [#tpu.dimension_semantics<parallel>, #tpu.dimension_semantics<arbitrary>], iteration_bounds = array<i64: 1, 1>, scalar_prefetch = 0 : i64, scratch_operands = 0 : i64, tpu.core_type = #tpu.core_type<tc>, window_params = [{transform_indices = @transform_0, window_bounds = array<i64: 4, 8, 128>}, {transform_indices = @transform_1, window_bounds = array<i64: 8, 128>}, {transform_indices = @transform_2, window_bounds = array<i64: 8, 128>}]} {
    %c0_i32 = arith.constant 0 : i32
    %0 = arith.cmpi eq, %arg1, %c0_i32 : i32
    %1 = arith.extui %0 : i1 to i32
    %c0_i32_0 = arith.constant 0 : i32
    %2 = arith.cmpi ne, %1, %c0_i32_0 : i32
    scf.if %2 {
      %cst_22 = arith.constant 0.000000e+00 : f32
      %61 = vector.broadcast %cst_22 : f32 to vector<8x128xf32>
      %c0_23 = arith.constant 0 : index
      %c0_24 = arith.constant 0 : index
      %62 = vector.load %arg4[%c0_23, %c0_24] : memref<8x128xf32, #tpu.memory_space<vmem>>, vector<8x128xf32>
      tpu.vector_store %arg4[%c0_23, %c0_24], %61 {strides = array<i32>} : memref<8x128xf32, #tpu.memory_space<vmem>>, vector<8x128xf32>,
    } else {
    }
    %c0 = arith.constant 0 : index
    %c0_1 = arith.constant 0 : index
    %3 = vector.load %arg3[%c0, %c0_1] : memref<8x128xf32, #tpu.memory_space<vmem>>, vector<8x128xf32>
    %cst = arith.constant 0.000000e+00 : f32
    %4 = vector.broadcast %cst : f32 to vector<8x128xf32>
    %5 = arith.cmpf oge, %3, %4 : vector<8x128xf32>
    %6 = arith.extui %5 : vector<8x128xi1> to vector<8x128xi32>
    %7 = arith.sitofp %6 : vector<8x128xi32> to vector<8x128xf32>
    %8 = arith.fptosi %3 : vector<8x128xf32> to vector<8x128xi32>
    %c0_2 = arith.constant 0 : index
    %c0_3 = arith.constant 0 : index
    %c0_4 = arith.constant 0 : index
    %9 = vector.load %arg2[%c0_2, %c0_3, %c0_4] : memref<4x8x128xf32, #tpu.memory_space<vmem>>, vector<1x8x128xf32>
    %10 = vector.shape_cast %9 : vector<1x8x128xf32> to vector<8x128xf32>
    %c1 = arith.constant 1 : index
    %c0_5 = arith.constant 0 : index
    %c0_6 = arith.constant 0 : index
    %11 = vector.load %arg2[%c1, %c0_5, %c0_6] : memref<4x8x128xf32, #tpu.memory_space<vmem>>, vector<1x8x128xf32>
    %12 = vector.shape_cast %11 : vector<1x8x128xf32> to vector<8x128xf32>
    %c2 = arith.constant 2 : index
    %c0_7 = arith.constant 0 : index
    %c0_8 = arith.constant 0 : index
    %13 = vector.load %arg2[%c2, %c0_7, %c0_8] : memref<4x8x128xf32, #tpu.memory_space<vmem>>, vector<1x8x128xf32>
    %14 = vector.shape_cast %13 : vector<1x8x128xf32> to vector<8x128xf32>
    %c3 = arith.constant 3 : index
    %c0_9 = arith.constant 0 : index
    %c0_10 = arith.constant 0 : index
    %15 = vector.load %arg2[%c3, %c0_9, %c0_10] : memref<4x8x128xf32, #tpu.memory_space<vmem>>, vector<1x8x128xf32>
    %16 = vector.shape_cast %15 : vector<1x8x128xf32> to vector<8x128xf32>
    %17 = arith.maximumf %10, %12 : vector<8x128xf32>
    %18 = arith.maximumf %17, %14 : vector<8x128xf32>
    %19 = arith.maximumf %18, %16 : vector<8x128xf32>
    %cst_11 = arith.constant 0.000000e+00 : f32
    %20 = vector.broadcast %cst_11 : f32 to vector<8x128xf32>
    %cst_12 = arith.constant 0.000000e+00 : f32
    %21 = vector.broadcast %cst_12 : f32 to vector<8x128xf32>
    %22 = arith.subf %10, %19 : vector<8x128xf32>
    %23 = math.exp %22 : vector<8x128xf32>
    %24 = arith.addf %20, %23 : vector<8x128xf32>
    %c0_i32_13 = arith.constant 0 : i32
    %25 = vector.broadcast %c0_i32_13 : i32 to vector<8x128xi32>
    %26 = arith.cmpi eq, %8, %25 : vector<8x128xi32>
    %cst_14 = arith.constant 0.000000e+00 : f32
    %27 = vector.broadcast %cst_14 : f32 to vector<8x128xf32>
    %28 = arith.select %26, %10, %27 : vector<8x128xi1>, vector<8x128xf32>
    %29 = arith.addf %21, %28 : vector<8x128xf32>
    %30 = arith.subf %12, %19 : vector<8x128xf32>
    %31 = math.exp %30 : vector<8x128xf32>
    %32 = arith.addf %24, %31 : vector<8x128xf32>
    %c1_i32 = arith.constant 1 : i32
    %33 = vector.broadcast %c1_i32 : i32 to vector<8x128xi32>
    %34 = arith.cmpi eq, %8, %33 : vector<8x128xi32>
    %cst_15 = arith.constant 0.000000e+00 : f32
    %35 = vector.broadcast %cst_15 : f32 to vector<8x128xf32>
    %36 = arith.select %34, %12, %35 : vector<8x128xi1>, vector<8x128xf32>
    %37 = arith.addf %29, %36 : vector<8x128xf32>
    %38 = arith.subf %14, %19 : vector<8x128xf32>
    %39 = math.exp %38 : vector<8x128xf32>
    %40 = arith.addf %32, %39 : vector<8x128xf32>
    %c2_i32 = arith.constant 2 : i32
    %41 = vector.broadcast %c2_i32 : i32 to vector<8x128xi32>
    %42 = arith.cmpi eq, %8, %41 : vector<8x128xi32>
    %cst_16 = arith.constant 0.000000e+00 : f32
    %43 = vector.broadcast %cst_16 : f32 to vector<8x128xf32>
    %44 = arith.select %42, %14, %43 : vector<8x128xi1>, vector<8x128xf32>
    %45 = arith.addf %37, %44 : vector<8x128xf32>
    %46 = arith.subf %16, %19 : vector<8x128xf32>
    %47 = math.exp %46 : vector<8x128xf32>
    %48 = arith.addf %40, %47 : vector<8x128xf32>
    %c3_i32 = arith.constant 3 : i32
    %49 = vector.broadcast %c3_i32 : i32 to vector<8x128xi32>
    %50 = arith.cmpi eq, %8, %49 : vector<8x128xi32>
    %cst_17 = arith.constant 0.000000e+00 : f32
    %51 = vector.broadcast %cst_17 : f32 to vector<8x128xf32>
    %52 = arith.select %50, %16, %51 : vector<8x128xi1>, vector<8x128xf32>
    %53 = arith.addf %45, %52 : vector<8x128xf32>
    %54 = math.log %48 : vector<8x128xf32>
    %55 = arith.addf %54, %19 : vector<8x128xf32>
    %c0_18 = arith.constant 0 : index
    %c0_19 = arith.constant 0 : index
    %56 = vector.load %arg4[%c0_18, %c0_19] : memref<8x128xf32, #tpu.memory_space<vmem>>, vector<8x128xf32>
    %57 = arith.subf %55, %53 : vector<8x128xf32>
    %58 = arith.mulf %57, %7 : vector<8x128xf32>
    %59 = arith.addf %56, %58 : vector<8x128xf32>
    %c0_20 = arith.constant 0 : index
    %c0_21 = arith.constant 0 : index
    %60 = vector.load %arg4[%c0_20, %c0_21] : memref<8x128xf32, #tpu.memory_space<vmem>>, vector<8x128xf32>
    tpu.vector_store %arg4[%c0_20, %c0_21], %59 {strides = array<i32>} : memref<8x128xf32, #tpu.memory_space<vmem>>, vector<8x128xf32>,
    return
  }
  func.func @transform_0(%arg0: i32, %arg1: i32) -> (i32, i32, i32) {
    %c1_i32 = arith.constant 1 : i32
    %0 = arith.muli %arg0, %c1_i32 : i32
    %1 = arith.addi %0, %arg1 : i32
    %c0_i32 = arith.constant 0 : i32
    %c0_i32_0 = arith.constant 0 : i32
    %c0_i32_1 = arith.constant 0 : i32
    return %c0_i32, %1, %c0_i32_0 : i32, i32, i32
  }
  func.func @transform_1(%arg0: i32, %arg1: i32) -> (i32, i32) {
    %c1_i32 = arith.constant 1 : i32
    %0 = arith.muli %arg0, %c1_i32 : i32
    %1 = arith.addi %0, %arg1 : i32
    %c0_i32 = arith.constant 0 : i32
    %c0_i32_0 = arith.constant 0 : i32
    return %1, %c0_i32 : i32, i32
  }
  func.func @transform_2(%arg0: i32, %arg1: i32) -> (i32, i32) {
    %c0_i32 = arith.constant 0 : i32
    %c0_i32_0 = arith.constant 0 : i32
    return %arg0, %c0_i32 : i32, i32
  }
}

</mosaic_0001>

<llo_original>
// kernel: tpu_custom_call.1
$region0: #{tpu_custom_call.1}
  #allocation0 [shape = 'u32[]', space=smem, size = 0x4, offset = 0x4, fixed_abs, tag = 'smem constant byte address 0x4 - core index']
  #allocation1 [shape = 'u32[144,128]{1,0:T(1,128)}', space=vmem, size = 0x12000, scoped, tag = 'internal scratch']
  %s0 = inlined_call_operand.hbm [shape: f32[4,8,128], index: 0, kind: input, shape index: {}]
  %s1 = inlined_call_operand.hbm [shape: f32[8,128], index: 1, kind: input, shape index: {}]
  %s2 = inlined_call_operand.hbm [shape: f32[8,128], index: 2, kind: output, shape index: {}]
  %s3 = sld [smem:[#allocation0]]
  $region30: #{tpu_custom_call.1} parent=0
    _
  %s5 = ssub.s32 1, %s3
  %s6 = scalar_select 0, %s5, %s3
  $region1: #{tpu_custom_call.1} parent=0
    #allocation2 [shape = 'u8[16384]{0}', space=vmem, size = 0x4000, scoped, tag = 'input window, operand 0, single buffered']
    #allocation3 [shape = 's32[1]{0}', space=sflag, size = 0x4, scoped, tag = 'scoped memory for tpu_custom_call.1']
    #allocation4 [shape = 's32[1]{0}', space=sflag, size = 0x4, scoped, tag = 'scoped memory for tpu_custom_call.1']
    #allocation5 [shape = 'u8[4096]{0}', space=vmem, size = 0x1000, scoped, tag = 'input window, operand 1, single buffered']
    #allocation6 [shape = 's32[1]{0}', space=sflag, size = 0x4, scoped, tag = 'scoped memory for tpu_custom_call.1']
    #allocation7 [shape = 'u8[4096]{0}', space=vmem, size = 0x1000, scoped, tag = 'output window, operand 0, single buffered']
    %7 = vsyncpa [#allocation3], 0
    %8 = vsyncpa [#allocation6], 0
    %9 = vsyncpa [#allocation4], 0
    // Predicated region
    $region2: #{tpu_custom_call.1} parent=1 // pred_check
      _
    $region3: #{tpu_custom_call.1} parent=1 // pred_check_branch
      %11 = sbr.rel (0) target = $region5
    $region4: #{tpu_custom_call.1} parent=1 // pred_region
      %s12 = sadd.s32 0, 0
      %s14 = ssub.s32 512, 512
      %15 = vsyncadd [#allocation3], %s14
      %s16 = smul.addr %s12, 128
      %s17 = scalar_lea.hbm %s0, %s16
      %s18 = sshll.u32 [#allocation2], 4
      %s19 = int_to_ptr.vmem [resolvable:$true] %s18
      %24 = dma.hbm_to_vmem [thread:$0]  %s17, 512, %s19, [#allocation3], 128, 128, 8
    $region5: #{tpu_custom_call.1} parent=1 // pred_fallthru
      _
    // Predicated region
    $region6: #{tpu_custom_call.1} parent=1 // pred_check
      _
    $region7: #{tpu_custom_call.1} parent=1 // pred_check_branch
      %26 = sbr.rel (0) target = $region9
    $region8: #{tpu_custom_call.1} parent=1 // pred_region
      %s27 = sadd.s32 0, 0
      %s29 = ssub.s32 128, 128
      %30 = vsyncadd [#allocation6], %s29
      %s31 = smul.addr %s27, 128
      %s32 = scalar_lea.hbm %s1, %s31
      %s34 = sshll.u32 [#allocation5], 4
      %s35 = int_to_ptr.vmem [resolvable:$true] %s34
      %37 = dma.hbm_to_vmem [thread:$0]  %s32, 128, %s35, [#allocation6]
    $region9: #{tpu_custom_call.1} parent=1 // pred_fallthru
      _
    // Predicated region
    $region10: #{tpu_custom_call.1} parent=1 // pred_check
      _
    $region11: #{tpu_custom_call.1} parent=1 // pred_check_branch
      %39 = sbr.rel (0) target = $region13
    $region12: #{tpu_custom_call.1} parent=1 // pred_region
      %40 = dma.done [#allocation3], 512
    $region13: #{tpu_custom_call.1} parent=1 // pred_fallthru
      _
    // Predicated region
    $region14: #{tpu_custom_call.1} parent=1 // pred_check
      _
    $region15: #{tpu_custom_call.1} parent=1 // pred_check_branch
      %42 = sbr.rel (0) target = $region17
    $region16: #{tpu_custom_call.1} parent=1 // pred_region
      %43 = dma.done [#allocation6], 128
    $region17: #{tpu_custom_call.1} parent=1 // pred_fallthru
      _
    %s44 = sadd.s32 0, 0
    %s45 = sadd.s32 0, 0
    %p46 = scmp.eq.s32.totalorder 0, 0
    // Predicated region
    $region18: #{tpu_custom_call.1} parent=1 // pred_check
      %p47 = pneg %p46
    $region19: #{tpu_custom_call.1} parent=1 // pred_check_branch
      %49 = sbr.rel (%p47) target = $region21
    $region20: #{tpu_custom_call.1} parent=1 // pred_region
      %50 = vst [vmem:[#allocation7] sm:$0xff] 0.0
    $region21: #{tpu_custom_call.1} parent=1 // pred_fallthru
      _
    %v51 = vld [vmem:[#allocation5] sm:$0xff]
    %vm52 = vcmp.ge.f32.partialorder %v51, 0.0
    %v53 = vsel %vm52, 1, 0
    %v54 = vcvt.s32.f32 %v53
    %v55 = vcvt.f32.s32.to.zero.pseudo %v51
    %v56 = vld [vmem:[#allocation2] sm:$0xff]
    %s57 = scalar_lea.vmem [#allocation2], 8
    %v58 = vld [vmem:[%s57] sm:$0xff]
    %s59 = scalar_lea.vmem [#allocation2], 16
    %v60 = vld [vmem:[%s59] sm:$0xff]
    %s61 = scalar_lea.vmem [#allocation2], 24
    %v62 = vld [vmem:[%s61] sm:$0xff]
    %v63 = vmax.f32 %v56, %v58
    %v64 = vmax.f32 %v63, %v60
    %v65 = vmax.f32 %v64, %v62
    %v66 = vsub.f32 %v56, %v65
    %v67 = vmul.f32 %v66, 1.442695
    %v68 = vpow.pop %v67
    %v69 = vadd.f32 %v68, 0.0
    %vm70 = vcmp.eq.s32.totalorder %v55, 0
    %v71 = vsel %vm70, %v56, 0.0
    %v72 = vadd.f32 %v71, 0.0
    %v73 = vsub.f32 %v58, %v65
    %v74 = vmul.f32 %v73, 1.442695
    %v75 = vpow.pop %v74
    %v76 = vadd.f32 %v69, %v75
    %vm77 = vcmp.eq.s32.totalorder %v55, 1
    %v78 = vsel %vm77, %v58, 0.0
    %v79 = vadd.f32 %v72, %v78
    %v80 = vsub.f32 %v60, %v65
    %v81 = vmul.f32 %v80, 1.442695
    %v82 = vpow.pop %v81
    %v83 = vadd.f32 %v76, %v82
    %vm84 = vcmp.eq.s32.totalorder %v55, 2
    %v85 = vsel %vm84, %v60, 0.0
    %v86 = vadd.f32 %v79, %v85
    %v87 = vsub.f32 %v62, %v65
    %v88 = vmul.f32 %v87, 1.442695
    %v89 = vpow.pop %v88
    %v90 = vadd.f32 %v83, %v89
    %vm91 = vcmp.eq.s32.totalorder %v55, 3
    %v92 = vsel %vm91, %v62, 0.0
    %v93 = vadd.f32 %v86, %v92
    %v94 = vlog2.pop %v90
    %v95 = vmul.f32 %v94, 0.6931472
    %v96 = vadd.f32 %v95, %v65
    %v97 = vld [vmem:[#allocation7] sm:$0xff]
    %v98 = vsub.f32 %v96, %v93
    %v99 = vmul.f32 %v98, %v54
    %v100 = vadd.f32 %v97, %v99
    %101 = vst [vmem:[#allocation7] sm:$0xff] %v100
    // Predicated region
    $region22: #{tpu_custom_call.1} parent=1 // pred_check
      _
    $region23: #{tpu_custom_call.1} parent=1 // pred_check_branch
      %103 = sbr.rel (0) target = $region25
    $region24: #{tpu_custom_call.1} parent=1 // pred_region
      %s105 = ssub.s32 128, 128
      %106 = vsyncadd [#allocation4], %s105
      %s108 = sshll.u32 [#allocation7], 4
      %s109 = int_to_ptr.vmem [resolvable:$true] %s108
      %111 = dma.vmem_to_hbm [thread:$0]  %s109, 128, %s2, [#allocation4]
    $region25: #{tpu_custom_call.1} parent=1 // pred_fallthru
      _
    // Predicated region
    $region26: #{tpu_custom_call.1} parent=1 // pred_check
      _
    $region27: #{tpu_custom_call.1} parent=1 // pred_check_branch
      %113 = sbr.rel (0) target = $region29
    $region28: #{tpu_custom_call.1} parent=1 // pred_region
      %114 = dma.done [#allocation4], 128
    $region29: #{tpu_custom_call.1} parent=1 // pred_fallthru
      _
    %115 = vsyncpa [#allocation3], 1
    %116 = vsyncpa [#allocation6], 1
    %117 = vsyncpa [#allocation4], 1

</llo_original>
